<compile_context>
chip_gen: v7x
topology: tpu7x:2x2x1
jax: 0.10.0
libtpu: 0.0.40
codegen_flags: <defaults>
</compile_context>

<pallas_src>
import jax
import jax.numpy as jnp
from jax.experimental import pallas as pl
from jax.experimental.pallas import tpu as pltpu


def _round_up(v, m):
    return (v + m - 1) // m * m


def _gcn_kernel(xr_ref, xf_ref, adj_ref, w_ref, b_ref, o_ref):
    # xr_ref : (Bt, TM,  D_in_p)  bf16   row tile of x (fc1 path)
    # xf_ref : (Bt, N_p, D_in_p)  bf16   full x (contraction operand of adj@x)
    # adj_ref: (Bt, TM,  N_p)     bf16   row tile of adj
    # w_ref  : (2*D_in_p, D_out_p) bf16  [W1^T ; W2^T]
    # b_ref  : (1, D_out_p)        f32   b1 + b2
    # o_ref  : (Bt, TM, D_out_p)
    bt, tm, dp = xr_ref.shape
    dop = o_ref.shape[-1]

    xr = xr_ref[...]
    xf = xf_ref[...]
    a = adj_ref[...]

    # adj @ x : batched MXU matmul, f32 accumulation.
    ax = jnp.einsum("btn,bnd->btd", a, xf,
                    preferred_element_type=jnp.float32)

    # Fused projection: one MXU matmul with K = 2*D_in_p (lane-aligned concat).
    cat = jnp.concatenate([xr, ax.astype(xr.dtype)], axis=-1)    # (bt, tm, 2*dp)
    cat = cat.reshape(bt * tm, 2 * dp)
    proj = jnp.dot(cat, w_ref[...], preferred_element_type=jnp.float32)
    proj = proj + b_ref[...]                                     # (bt*tm, dop) + (1, dop)
    o_ref[...] = proj.reshape(bt, tm, dop).astype(o_ref.dtype)


def _pick_batch_tile(B, TM, N_p, D_in_p, D_out_p):
    """Fold as many batches per grid step as fits a conservative VMEM budget."""
    # bytes resident per batch per grid step (bf16 inputs, f32 output),
    # times 2 for double-buffering; budget well under v5e's 16 MiB scoped VMEM.
    per_batch = 2 * (TM * D_in_p + N_p * D_in_p + TM * N_p) + 4 * TM * D_out_p
    budget = 6 * 1024 * 1024
    for cand in range(B, 0, -1):
        if B % cand == 0 and 2 * cand * per_batch <= budget:
            return cand
    return 1


def graph_convolution(x, adj, w1, b1, w2, b2):
    """
    x:   (B, N, D_in)  float32
    adj: (B, N, N)     float32
    w1, w2: (D_out, D_in)  -- PyTorch nn.Linear weight layout
    b1, b2: (D_out,)
    returns (B, N, D_out), same dtype as x.
    """
    B, N, D_in = x.shape
    D_out = w1.shape[0]

    LANE = 128
    D_in_p = _round_up(D_in, LANE)
    D_out_p = _round_up(D_out, LANE)

    # Row tiling of adj: full rows if N is small, otherwise 256-row tiles
    # (multiple of 128, fits all chips' VMEM budgets after padding).
    N8 = _round_up(N, 8)
    if N8 <= 256:
        TM, N_p = N8, N8
    else:
        TM = 256
        N_p = _round_up(N, TM)

    Bt = _pick_batch_tile(B, TM, N_p, D_in_p, D_out_p)

    # --- wrapper-side glue: pad + cast (zero pads keep the math exact) ------
    x_p = jnp.pad(x.astype(jnp.bfloat16),
                  ((0, 0), (0, N_p - N), (0, D_in_p - D_in)))
    adj_p = jnp.pad(adj.astype(jnp.bfloat16),
                    ((0, 0), (0, N_p - N), (0, N_p - N)))

    w1p = jnp.pad(jnp.asarray(w1, jnp.float32).T.astype(jnp.bfloat16),
                  ((0, D_in_p - D_in), (0, D_out_p - D_out)))
    w2p = jnp.pad(jnp.asarray(w2, jnp.float32).T.astype(jnp.bfloat16),
                  ((0, D_in_p - D_in), (0, D_out_p - D_out)))
    w_cat = jnp.concatenate([w1p, w2p], axis=0)                  # (2*D_in_p, D_out_p)
    b_cat = jnp.pad(jnp.asarray(b1, jnp.float32) + jnp.asarray(b2, jnp.float32),
                    (0, D_out_p - D_out)).reshape(1, D_out_p)

    grid = (B // Bt, N_p // TM)
    out_p = pl.pallas_call(
        _gcn_kernel,
        out_shape=jax.ShapeDtypeStruct((B, N_p, D_out_p), x.dtype),
        grid_spec=pltpu.PrefetchScalarGridSpec(
            num_scalar_prefetch=0,
            grid=grid,
            in_specs=[
                pl.BlockSpec((Bt, TM, D_in_p), lambda b, r: (b, r, 0)),   # x rows
                pl.BlockSpec((Bt, N_p, D_in_p), lambda b, r: (b, 0, 0)),  # x full
                pl.BlockSpec((Bt, TM, N_p), lambda b, r: (b, r, 0)),      # adj rows
                pl.BlockSpec((2 * D_in_p, D_out_p), lambda b, r: (0, 0)), # W_cat
                pl.BlockSpec((1, D_out_p), lambda b, r: (0, 0)),          # fused bias
            ],
            out_specs=pl.BlockSpec((Bt, TM, D_out_p), lambda b, r: (b, r, 0)),
        ),
        compiler_params=pltpu.CompilerParams(
            dimension_semantics=("parallel", "parallel")),
    )(x_p, x_p, adj_p, w_cat, b_cat)

    return out_p[:, :N, :D_out]


def _init_linear_params(key, in_features, out_features):
    # Deterministic init mimicking torch.nn.Linear default:
    # U(-1/sqrt(in_features), 1/sqrt(in_features)) for weight and bias.
    kw, kb = jax.random.split(key)
    bound = 1.0 / (in_features ** 0.5)
    w = jax.random.uniform(kw, (out_features, in_features),
                           minval=-bound, maxval=bound, dtype=jnp.float32)
    b = jax.random.uniform(kb, (out_features,),
                           minval=-bound, maxval=bound, dtype=jnp.float32)
    return w, b


if __name__ == "__main__":
    key = jax.random.PRNGKey(0)
    k_x, k_adj, k_fc1, k_fc2 = jax.random.split(key, 4)

    B, N = 2, 8
    state_dim = 32
    out_state_dim = 32

    x = jax.random.normal(k_x, (B, N, state_dim), dtype=jnp.float32)
    adj = jax.random.uniform(k_adj, (B, N, N), dtype=jnp.float32)
    # row-normalize adjacency (typical GCN input; keeps values sane)
    adj = adj / jnp.sum(adj, axis=-1, keepdims=True)

    w1, b1 = _init_linear_params(k_fc1, state_dim, out_state_dim)
    w2, b2 = _init_linear_params(k_fc2, state_dim, out_state_dim)

    out = graph_convolution(x, adj, w1, b1, w2, b2)
    out = jax.block_until_ready(out)
    assert out.shape == (B, N, out_state_dim)

    # Reference #1: mirrors kernel numerics (bf16 operands, f32 accumulation).
    xb = x.astype(jnp.bfloat16)
    ab = adj.astype(jnp.bfloat16)
    w1b = w1.T.astype(jnp.bfloat16)
    w2b = w2.T.astype(jnp.bfloat16)
    axb = jnp.einsum("bnm,bmd->bnd", ab, xb,
                     preferred_element_type=jnp.float32).astype(jnp.bfloat16)
    ref_lp = (jnp.einsum("bnd,do->bno", xb, w1b, preferred_element_type=jnp.float32)
              + jnp.einsum("bnd,do->bno", axb, w2b, preferred_element_type=jnp.float32)
              + b1 + b2)
    assert jnp.allclose(out, ref_lp, atol=2e-2, rtol=2e-2), "mismatch vs bf16 reference"

    # Reference #2: full-f32 PyTorch semantics (loose tolerance for bf16 inputs).
    ref_f32 = (jnp.einsum("bnd,od->bno", x, w1) + b1
               + jnp.einsum("bnd,od->bno",
                            jnp.einsum("bnm,bmd->bnd", adj, x), w2) + b2)
    assert float(jnp.max(jnp.abs(out - ref_f32))) < 0.1, "mismatch vs f32 reference"

    print("KERNEL_OK")
</pallas_src>

<mosaic_0001>
module attributes {stable_mosaic.version = 11 : i64} {
  func.func @_gcn_kernel(%arg0: i32, %arg1: i32, %arg2: memref<2x8x128xbf16, #tpu.memory_space<vmem>>, %arg3: memref<2x8x128xbf16, #tpu.memory_space<vmem>>, %arg4: memref<2x8x8xbf16, #tpu.memory_space<vmem>>, %arg5: memref<256x128xbf16, #tpu.memory_space<vmem>>, %arg6: memref<1x128xf32, #tpu.memory_space<vmem>>, %arg7: memref<2x8x128xf32, #tpu.memory_space<vmem>>) attributes {dimension_semantics = [#tpu.dimension_semantics<parallel>, #tpu.dimension_semantics<parallel>], iteration_bounds = array<i64: 1, 1>, scalar_prefetch = 0 : i64, scratch_operands = 0 : i64, tpu.core_type = #tpu.core_type<tc>, window_params = [{transform_indices = @transform_0, window_bounds = array<i64: 2, 8, 128>}, {transform_indices = @transform_1, window_bounds = array<i64: 2, 8, 128>}, {transform_indices = @transform_2, window_bounds = array<i64: 2, 8, 8>}, {pipeline_mode = #tpu.pipeline_mode<synchronous>, transform_indices = @transform_3, window_bounds = array<i64: 256, 128>}, {pipeline_mode = #tpu.pipeline_mode<synchronous>, transform_indices = @transform_4, window_bounds = array<i64: 1, 128>}, {transform_indices = @transform_5, window_bounds = array<i64: 2, 8, 128>}]} {
    %c0 = arith.constant 0 : index
    %c0_0 = arith.constant 0 : index
    %c0_1 = arith.constant 0 : index
    %0 = vector.load %arg2[%c0, %c0_0, %c0_1] : memref<2x8x128xbf16, #tpu.memory_space<vmem>>, vector<2x8x128xbf16>
    %c0_2 = arith.constant 0 : index
    %c0_3 = arith.constant 0 : index
    %c0_4 = arith.constant 0 : index
    %1 = vector.load %arg3[%c0_2, %c0_3, %c0_4] : memref<2x8x128xbf16, #tpu.memory_space<vmem>>, vector<2x8x128xbf16>
    %c0_5 = arith.constant 0 : index
    %c0_6 = arith.constant 0 : index
    %c0_7 = arith.constant 0 : index
    %2 = vector.load %arg4[%c0_5, %c0_6, %c0_7] : memref<2x8x8xbf16, #tpu.memory_space<vmem>>, vector<2x8x8xbf16>
    "tpu.trace_start"() <{level = 10 : i32, message = "btn,bnd->btd"}> : () -> ()
    %cst = arith.constant dense<0.000000e+00> : vector<2x8x128xf32>
    %3 = tpu.matmul %2, %1, %cst {dimension_numbers = #tpu.dot_dimension_numbers<[2], [1], [1], [2], [0, 0, 0, 1, 1, 2], [0], [0]>} : vector<2x8x8xbf16>, vector<2x8x128xbf16>, vector<2x8x128xf32> -> vector<2x8x128xf32>
    "tpu.trace_stop"() : () -> ()
    %4 = arith.truncf %3 : vector<2x8x128xf32> to vector<2x8x128xbf16>
    %5 = tpu.concatenate %0, %4 in 2 : vector<2x8x128xbf16>, vector<2x8x128xbf16> -> vector<2x8x256xbf16>
    %6 = vector.shape_cast %5 : vector<2x8x256xbf16> to vector<16x256xbf16>
    %c0_8 = arith.constant 0 : index
    %c0_9 = arith.constant 0 : index
    %7 = vector.load %arg5[%c0_8, %c0_9] : memref<256x128xbf16, #tpu.memory_space<vmem>>, vector<256x128xbf16>
    %cst_10 = arith.constant dense<0.000000e+00> : vector<16x128xf32>
    %8 = tpu.matmul %6, %7, %cst_10 {dimension_numbers = #tpu.dot_dimension_numbers<[1], [0], [0], [1], [0, 0, 1, 1], [], []>} : vector<16x256xbf16>, vector<256x128xbf16>, vector<16x128xf32> -> vector<16x128xf32>
    %c0_11 = arith.constant 0 : index
    %c0_12 = arith.constant 0 : index
    %9 = vector.load %arg6[%c0_11, %c0_12] : memref<1x128xf32, #tpu.memory_space<vmem>>, vector<1x128xf32>
    %10 = vector.broadcast %9 : vector<1x128xf32> to vector<16x128xf32>
    %11 = arith.addf %8, %10 : vector<16x128xf32>
    %12 = vector.shape_cast %11 : vector<16x128xf32> to vector<2x8x128xf32>
    %c0_13 = arith.constant 0 : index
    %c0_14 = arith.constant 0 : index
    %c0_15 = arith.constant 0 : index
    %13 = vector.load %arg7[%c0_13, %c0_14, %c0_15] : memref<2x8x128xf32, #tpu.memory_space<vmem>>, vector<2x8x128xf32>
    tpu.vector_store %arg7[%c0_13, %c0_14, %c0_15], %12 {strides = array<i32>} : memref<2x8x128xf32, #tpu.memory_space<vmem>>, vector<2x8x128xf32>,
    return
  }
  func.func @transform_0(%arg0: i32, %arg1: i32) -> (i32, i32, i32) {
    %c0_i32 = arith.constant 0 : i32
    %c0_i32_0 = arith.constant 0 : i32
    return %arg0, %arg1, %c0_i32 : i32, i32, i32
  }
  func.func @transform_1(%arg0: i32, %arg1: i32) -> (i32, i32, i32) {
    %c0_i32 = arith.constant 0 : i32
    %c0_i32_0 = arith.constant 0 : i32
    %c0_i32_1 = arith.constant 0 : i32
    return %arg0, %c0_i32, %c0_i32_0 : i32, i32, i32
  }
  func.func @transform_2(%arg0: i32, %arg1: i32) -> (i32, i32, i32) {
    %c0_i32 = arith.constant 0 : i32
    %c0_i32_0 = arith.constant 0 : i32
    return %arg0, %arg1, %c0_i32 : i32, i32, i32
  }
  func.func @transform_3(%arg0: i32, %arg1: i32) -> (i32, i32) {
    %c0_i32 = arith.constant 0 : i32
    %c0_i32_0 = arith.constant 0 : i32
    %c0_i32_1 = arith.constant 0 : i32
    return %c0_i32, %c0_i32_0 : i32, i32
  }
  func.func @transform_4(%arg0: i32, %arg1: i32) -> (i32, i32) {
    %c0_i32 = arith.constant 0 : i32
    %c0_i32_0 = arith.constant 0 : i32
    %c0_i32_1 = arith.constant 0 : i32
    return %c0_i32, %c0_i32_0 : i32, i32
  }
  func.func @transform_5(%arg0: i32, %arg1: i32) -> (i32, i32, i32) {
    %c0_i32 = arith.constant 0 : i32
    %c0_i32_0 = arith.constant 0 : i32
    return %arg0, %arg1, %c0_i32 : i32, i32, i32
  }
}

</mosaic_0001>

<llo_original>
// kernel: tpu_custom_call.1
$region0: #{tpu_custom_call.1}
  #allocation0 [shape = 'u32[]', space=smem, size = 0x4, offset = 0x4, fixed_abs, tag = 'smem constant byte address 0x4 - core index']
  #allocation1 [shape = 'u32[144,128]{1,0:T(1,128)}', space=vmem, size = 0x12000, scoped, tag = 'internal scratch']
  %s0 = inlined_call_operand.hbm [shape: bf16[2,8,128], index: 0, kind: input, shape index: {}]
  %s1 = inlined_call_operand.hbm [shape: bf16[2,8,128], index: 1, kind: input, shape index: {}]
  %s2 = inlined_call_operand.hbm [shape: bf16[2,8,8], index: 2, kind: input, shape index: {}]
  %s3 = inlined_call_operand.hbm [shape: bf16[256,128], index: 3, kind: input, shape index: {}]
  %s4 = inlined_call_operand.vmem [shape: f32[1,128], index: 4, kind: input, shape index: {}]
  %s5 = inlined_call_operand.hbm [shape: f32[2,8,128], index: 5, kind: output, shape index: {}]
  %s6 = sld [smem:[#allocation0]]
  $region46: #{tpu_custom_call.1} parent=0
    _
  %s8 = ssub.s32 1, %s6
  %s9 = scalar_select 0, %s8, %s6
  $region1: #{tpu_custom_call.1} parent=0
    #allocation2 [shape = 'u8[4096]{0}', space=vmem, size = 0x1000, scoped, tag = 'input window, operand 0, single buffered']
    #allocation3 [shape = 's32[1]{0}', space=sflag, size = 0x4, scoped, tag = 'scoped memory for tpu_custom_call.1']
    #allocation4 [shape = 's32[1]{0}', space=sflag, size = 0x4, scoped, tag = 'scoped memory for tpu_custom_call.1']
    #allocation5 [shape = 'u8[4096]{0}', space=vmem, size = 0x1000, scoped, tag = 'input window, operand 1, single buffered']
    #allocation6 [shape = 's32[1]{0}', space=sflag, size = 0x4, scoped, tag = 'scoped memory for tpu_custom_call.1']
    #allocation7 [shape = 'u8[4096]{0}', space=vmem, size = 0x1000, scoped, tag = 'input window, operand 2, single buffered']
    #allocation8 [shape = 'u8[65536]{0}', space=vmem, size = 0x10000, scoped, tag = 'input window, operand 3, single buffered']
    #allocation9 [shape = 's32[1]{0}', space=sflag, size = 0x4, scoped, tag = 'scoped memory for tpu_custom_call.1']
    #allocation10 [shape = 'u8[8192]{0}', space=vmem, size = 0x2000, scoped, tag = 'output window, operand 0, single buffered']
    %10 = vsyncpa [#allocation3], 0
    %11 = vsyncpa [#allocation6], 0
    %12 = vsyncpa [#allocation9], 0
    %13 = vsyncpa [#allocation4], 0
    // Predicated region
    $region2: #{tpu_custom_call.1} parent=1 // pred_check
      _
    $region3: #{tpu_custom_call.1} parent=1 // pred_check_branch
      %15 = sbr.rel (0) target = $region5
    $region4: #{tpu_custom_call.1} parent=1 // pred_region
      %s17 = ssub.s32 128, 128
      %18 = vsyncadd [#allocation3], %s17
      %s19 = sshll.u32 [#allocation2], 4
      %s20 = int_to_ptr.vmem [resolvable:$true] %s19
      %25 = dma.hbm_to_vmem [thread:$0]  %s0, 128, %s20, [#allocation3], 64, 64, 4
    $region5: #{tpu_custom_call.1} parent=1 // pred_fallthru
      _
    // Predicated region
    $region6: #{tpu_custom_call.1} parent=1 // pred_check
      _
    $region7: #{tpu_custom_call.1} parent=1 // pred_check_branch
      %27 = sbr.rel (0) target = $region9
    $region8: #{tpu_custom_call.1} parent=1 // pred_region
      %s29 = ssub.s32 128, 128
      %30 = vsyncadd [#allocation6], %s29
      %s31 = sshll.u32 [#allocation5], 4
      %s32 = int_to_ptr.vmem [resolvable:$true] %s31
      %37 = dma.hbm_to_vmem [thread:$0]  %s1, 128, %s32, [#allocation6], 64, 64, 4
    $region9: #{tpu_custom_call.1} parent=1 // pred_fallthru
      _
    // Predicated region
    $region10: #{tpu_custom_call.1} parent=1 // pred_check
      _
    $region11: #{tpu_custom_call.1} parent=1 // pred_check_branch
      %39 = sbr.rel (0) target = $region13
    $region12: #{tpu_custom_call.1} parent=1 // pred_region
      %s41 = ssub.s32 128, 128
      %42 = vsyncadd [#allocation6], %s41
      %s43 = sshll.u32 [#allocation7], 4
      %s44 = int_to_ptr.vmem [resolvable:$true] %s43
      %49 = dma.hbm_to_vmem [thread:$0]  %s2, 128, %s44, [#allocation6], 64, 64, 4
    $region13: #{tpu_custom_call.1} parent=1 // pred_fallthru
      _
    // Predicated region
    $region14: #{tpu_custom_call.1} parent=1 // pred_check
      _
    $region15: #{tpu_custom_call.1} parent=1 // pred_check_branch
      %51 = sbr.rel (0) target = $region17
    $region16: #{tpu_custom_call.1} parent=1 // pred_region
      %s53 = ssub.s32 2048, 2048
      %54 = vsyncadd [#allocation9], %s53
      %s55 = sshll.u32 [#allocation8], 4
      %s56 = int_to_ptr.vmem [resolvable:$true] %s55
      %61 = dma.hbm_to_vmem [thread:$0]  %s3, 2048, %s56, [#allocation9], 64, 64, 4
    $region17: #{tpu_custom_call.1} parent=1 // pred_fallthru
      _
    // Predicated region
    $region18: #{tpu_custom_call.1} parent=1 // pred_check
      _
    $region19: #{tpu_custom_call.1} parent=1 // pred_check_branch
      %63 = sbr.rel (0) target = $region21
    $region20: #{tpu_custom_call.1} parent=1 // pred_region
      _
    $region21: #{tpu_custom_call.1} parent=1 // pred_fallthru
      _
    // Predicated region
    $region22: #{tpu_custom_call.1} parent=1 // pred_check
      _
    $region23: #{tpu_custom_call.1} parent=1 // pred_check_branch
      %65 = sbr.rel (0) target = $region25
    $region24: #{tpu_custom_call.1} parent=1 // pred_region
      %66 = dma.done [#allocation3], 128
    $region25: #{tpu_custom_call.1} parent=1 // pred_fallthru
      _
    // Predicated region
    $region26: #{tpu_custom_call.1} parent=1 // pred_check
      _
    $region27: #{tpu_custom_call.1} parent=1 // pred_check_branch
      %68 = sbr.rel (0) target = $region29
    $region28: #{tpu_custom_call.1} parent=1 // pred_region
      %69 = dma.done [#allocation6], 128
    $region29: #{tpu_custom_call.1} parent=1 // pred_fallthru
      _
    // Predicated region
    $region30: #{tpu_custom_call.1} parent=1 // pred_check
      _
    $region31: #{tpu_custom_call.1} parent=1 // pred_check_branch
      %71 = sbr.rel (0) target = $region33
    $region32: #{tpu_custom_call.1} parent=1 // pred_region
      %72 = dma.done [#allocation6], 128
    $region33: #{tpu_custom_call.1} parent=1 // pred_fallthru
      _
    // Predicated region
    $region34: #{tpu_custom_call.1} parent=1 // pred_check
      _
    $region35: #{tpu_custom_call.1} parent=1 // pred_check_branch
      %74 = sbr.rel (0) target = $region37
    $region36: #{tpu_custom_call.1} parent=1 // pred_region
      %75 = dma.done [#allocation9], 2048
    $region37: #{tpu_custom_call.1} parent=1 // pred_fallthru
      _
    %v77 = vld [vmem:[#allocation2] sm:$0xf]
    %v78 = vld [vmem:[#allocation2 + $0x4] sm:$0xf]
    %v79 = vld [vmem:[#allocation5] sm:$0xf]
    %v80 = vld [vmem:[#allocation5 + $0x4] sm:$0xf]
    %v81 = vld [vmem:[#allocation7] sm:$0xf]
    %v82 = vld [vmem:[#allocation7 + $0x4] sm:$0xf]
    %vm83 = vcmask 64512
    %v85 = vsel %vm83, %v81, 0
    %vm87 = vcmask 1043456
    %v89 = vsel %vm87, %v79, 0
    %91 = vmatprep.subr.bf16.mxu0 0
    %92 = vmatpush1.bf16.msra.mxu0 %v89
    %93 = vmatprep.subr.bf16.mxu0 0
    %94 = vmatpush1.bf16.msra.mxu0 0
    %95 = vmatprep.subr.bf16.mxu0 0
    %96 = vmatpush1.bf16.msra.mxu0 0
    %97 = vmatprep.subr.bf16.mxu0 0
    %98 = vmatpush1.bf16.msra.mxu0 0
    %99 = vmatprep.subr.bf16.mxu0 0
    %100 = vmatpush1.bf16.msra.mxu0 0
    %101 = vmatprep.subr.bf16.mxu0 0
    %102 = vmatpush1.bf16.msra.mxu0 0
    %103 = vmatprep.subr.bf16.mxu0 0
    %104 = vmatpush1.bf16.msra.mxu0 0
    %105 = vmatprep.subr.bf16.mxu0 0
    %106 = vmatpush1.bf16.msra.mxu0 0
    %107 = vmatprep.subr.bf16.mxu0 0
    %108 = vmatpush1.bf16.msra.mxu0 0
    %109 = vmatprep.subr.bf16.mxu0 0
    %110 = vmatpush1.bf16.msra.mxu0 0
    %111 = vmatprep.subr.bf16.mxu0 0
    %112 = vmatpush1.bf16.msra.mxu0 0
    %113 = vmatprep.subr.bf16.mxu0 0
    %114 = vmatpush1.bf16.msra.mxu0 0
    %115 = vmatprep.subr.bf16.mxu0 0
    %116 = vmatpush1.bf16.msra.mxu0 0
    %117 = vmatprep.subr.bf16.mxu0 0
    %118 = vmatpush1.bf16.msra.mxu0 0
    %119 = vmatprep.subr.bf16.mxu0 0
    %120 = vmatpush1.bf16.msra.mxu0 0
    %121 = vmatprep.subr.bf16.mxu0 0
    %122 = vmatpush1.bf16.msra.mxu0 0
    %123 = vmatprep.mubr.bf16.mxu0 0
    %124 = vmatmul.mubr.bf16.gmra.mrb[0].mxu0 %v85
    %v125 = vpop.f32.mrb[0].mxu0
    %v126 = vadd.f32 0.0, %v125
    %v127 = vpop.f32.mrb[0].mxu0
    %v128 = vpop.f32.mrb[0].mxu0
    %v129 = vpop.f32.mrb[0].mxu0
    %130 = vdwg.mxu0
    %v132 = vsel %vm83, %v82, 0
    %v135 = vsel %vm87, %v80, 0
    %137 = vmatprep.subr.bf16.mxu0 0
    %138 = vmatpush1.bf16.msra.mxu0 %v135
    %139 = vmatprep.subr.bf16.mxu0 0
    %140 = vmatpush1.bf16.msra.mxu0 0
    %141 = vmatprep.subr.bf16.mxu0 0
    %142 = vmatpush1.bf16.msra.mxu0 0
    %143 = vmatprep.subr.bf16.mxu0 0
    %144 = vmatpush1.bf16.msra.mxu0 0
    %145 = vmatprep.subr.bf16.mxu0 0
    %146 = vmatpush1.bf16.msra.mxu0 0
    %147 = vmatprep.subr.bf16.mxu0 0
    %148 = vmatpush1.bf16.msra.mxu0 0
    %149 = vmatprep.subr.bf16.mxu0 0
    %150 = vmatpush1.bf16.msra.mxu0 0
    %151 = vmatprep.subr.bf16.mxu0 0
    %152 = vmatpush1.bf16.msra.mxu0 0
    %153 = vmatprep.subr.bf16.mxu0 0
    %154 = vmatpush1.bf16.msra.mxu0 0
    %155 = vmatprep.subr.bf16.mxu0 0
    %156 = vmatpush1.bf16.msra.mxu0 0
    %157 = vmatprep.subr.bf16.mxu0 0
    %158 = vmatpush1.bf16.msra.mxu0 0
    %159 = vmatprep.subr.bf16.mxu0 0
    %160 = vmatpush1.bf16.msra.mxu0 0
    %161 = vmatprep.subr.bf16.mxu0 0
    %162 = vmatpush1.bf16.msra.mxu0 0
    %163 = vmatprep.subr.bf16.mxu0 0
    %164 = vmatpush1.bf16.msra.mxu0 0
    %165 = vmatprep.subr.bf16.mxu0 0
    %166 = vmatpush1.bf16.msra.mxu0 0
    %167 = vmatprep.subr.bf16.mxu0 0
    %168 = vmatpush1.bf16.msra.mxu0 0
    %169 = vmatprep.mubr.bf16.mxu0 0
    %170 = vmatmul.mubr.bf16.gmra.mrb[0].mxu0 %v132
    %v171 = vpop.f32.mrb[0].mxu0
    %v172 = vadd.f32 0.0, %v171
    %v173 = vpop.f32.mrb[0].mxu0
    %v174 = vpop.f32.mrb[0].mxu0
    %v175 = vpop.f32.mrb[0].mxu0
    %176 = vdwg.mxu0
    %v177 = vpack.c.bf16 %v126, %v126
    %v178 = vpack.c.bf16 %v172, %v172
    %v183 = vunpack.c.l.b16 %v77
    %v184 = vunpack.c.l.b16 %v177
    %v185 = vunpack.c.l.b16 %v78
    %v186 = vunpack.c.l.b16 %v178
    %v187 = vld [vmem:[#allocation8] sm:$0xf]
    %v188 = vld [vmem:[#allocation8 + $0x4] sm:$0xf]
    %v189 = vld [vmem:[#allocation8 + $0x8] sm:$0xf]
    %v190 = vld [vmem:[#allocation8 + $0xc] sm:$0xf]
    %v191 = vld [vmem:[#allocation8 + $0x10] sm:$0xf]
    %v192 = vld [vmem:[#allocation8 + $0x14] sm:$0xf]
    %v193 = vld [vmem:[#allocation8 + $0x18] sm:$0xf]
    %v194 = vld [vmem:[#allocation8 + $0x1c] sm:$0xf]
    %v195 = vld [vmem:[#allocation8 + $0x20] sm:$0xf]
    %v196 = vld [vmem:[#allocation8 + $0x24] sm:$0xf]
    %v197 = vld [vmem:[#allocation8 + $0x28] sm:$0xf]
    %v198 = vld [vmem:[#allocation8 + $0x2c] sm:$0xf]
    %v199 = vld [vmem:[#allocation8 + $0x30] sm:$0xf]
    %v200 = vld [vmem:[#allocation8 + $0x34] sm:$0xf]
    %v201 = vld [vmem:[#allocation8 + $0x38] sm:$0xf]
    %v202 = vld [vmem:[#allocation8 + $0x3c] sm:$0xf]
    %v203 = vld [vmem:[#allocation8 + $0x40] sm:$0xf]
    %v204 = vld [vmem:[#allocation8 + $0x44] sm:$0xf]
    %v205 = vld [vmem:[#allocation8 + $0x48] sm:$0xf]
    %v206 = vld [vmem:[#allocation8 + $0x4c] sm:$0xf]
    %v207 = vld [vmem:[#allocation8 + $0x50] sm:$0xf]
    %v208 = vld [vmem:[#allocation8 + $0x54] sm:$0xf]
    %v209 = vld [vmem:[#allocation8 + $0x58] sm:$0xf]
    %v210 = vld [vmem:[#allocation8 + $0x5c] sm:$0xf]
    %v211 = vld [vmem:[#allocation8 + $0x60] sm:$0xf]
    %v212 = vld [vmem:[#allocation8 + $0x64] sm:$0xf]
    %v213 = vld [vmem:[#allocation8 + $0x68] sm:$0xf]
    %v214 = vld [vmem:[#allocation8 + $0x6c] sm:$0xf]
    %v215 = vld [vmem:[#allocation8 + $0x70] sm:$0xf]
    %v216 = vld [vmem:[#allocation8 + $0x74] sm:$0xf]
    %v217 = vld [vmem:[#allocation8 + $0x78] sm:$0xf]
    %v218 = vld [vmem:[#allocation8 + $0x7c] sm:$0xf]
    %v219 = vld [vmem:[%s4] sm:$0x1]
    %v221 = vlaneseq
    %v222 = vshrl.u32 %v221, 7
    %v223 = vsub.s32 0, %v222
    %v224 = vrot.slane %v219, %v223
    %v226 = vpack.c.b16 %v185, %v183
    %v227 = vpack.c.b16 %v186, %v184
    %v262 = vunpack.c.l.b16 %v187
    %v263 = vunpack.c.l.b16 %v188
    %v264 = vunpack.c.l.b16 %v189
    %v265 = vunpack.c.l.b16 %v190
    %v266 = vunpack.c.l.b16 %v191
    %v267 = vunpack.c.l.b16 %v192
    %v268 = vunpack.c.l.b16 %v193
    %v269 = vunpack.c.l.b16 %v194
    %v270 = vunpack.c.l.b16 %v195
    %v271 = vunpack.c.l.b16 %v196
    %v272 = vunpack.c.l.b16 %v197
    %v273 = vunpack.c.l.b16 %v198
    %v274 = vunpack.c.l.b16 %v199
    %v275 = vunpack.c.l.b16 %v200
    %v276 = vunpack.c.l.b16 %v201
    %v277 = vunpack.c.l.b16 %v202
    %v278 = vunpack.c.l.b16 %v203
    %v279 = vunpack.c.l.b16 %v204
    %v280 = vunpack.c.l.b16 %v205
    %v281 = vunpack.c.l.b16 %v206
    %v282 = vunpack.c.l.b16 %v207
    %v283 = vunpack.c.l.b16 %v208
    %v284 = vunpack.c.l.b16 %v209
    %v285 = vunpack.c.l.b16 %v210
    %v286 = vunpack.c.l.b16 %v211
    %v287 = vunpack.c.l.b16 %v212
    %v288 = vunpack.c.l.b16 %v213
    %v289 = vunpack.c.l.b16 %v214
    %v290 = vunpack.c.l.b16 %v215
    %v291 = vunpack.c.l.b16 %v216
    %v292 = vunpack.c.l.b16 %v217
    %v293 = vunpack.c.l.b16 %v218
    %v294 = vpack.c.b16 %v263, %v262
    %v295 = vpack.c.b16 %v265, %v264
    %v296 = vpack.c.b16 %v267, %v266
    %v297 = vpack.c.b16 %v269, %v268
    %v298 = vpack.c.b16 %v271, %v270
    %v299 = vpack.c.b16 %v273, %v272
    %v300 = vpack.c.b16 %v275, %v274
    %v301 = vpack.c.b16 %v277, %v276
    %v302 = vpack.c.b16 %v279, %v278
    %v303 = vpack.c.b16 %v281, %v280
    %v304 = vpack.c.b16 %v283, %v282
    %v305 = vpack.c.b16 %v285, %v284
    %v306 = vpack.c.b16 %v287, %v286
    %v307 = vpack.c.b16 %v289, %v288
    %v308 = vpack.c.b16 %v291, %v290
    %v309 = vpack.c.b16 %v293, %v292
    %326 = vmatprep.subr.bf16.mxu0 0
    %327 = vmatpush1.bf16.msra.mxu0 %v294
    %328 = vmatprep.subr.bf16.mxu0 0
    %329 = vmatpush1.bf16.msra.mxu0 %v295
    %330 = vmatprep.subr.bf16.mxu0 0
    %331 = vmatpush1.bf16.msra.mxu0 %v296
    %332 = vmatprep.subr.bf16.mxu0 0
    %333 = vmatpush1.bf16.msra.mxu0 %v297
    %334 = vmatprep.subr.bf16.mxu0 0
    %335 = vmatpush1.bf16.msra.mxu0 %v298
    %336 = vmatprep.subr.bf16.mxu0 0
    %337 = vmatpush1.bf16.msra.mxu0 %v299
    %338 = vmatprep.subr.bf16.mxu0 0
    %339 = vmatpush1.bf16.msra.mxu0 %v300
    %340 = vmatprep.subr.bf16.mxu0 0
    %341 = vmatpush1.bf16.msra.mxu0 %v301
    %342 = vmatprep.subr.bf16.mxu0 0
    %343 = vmatpush1.bf16.msra.mxu0 %v302
    %344 = vmatprep.subr.bf16.mxu0 0
    %345 = vmatpush1.bf16.msra.mxu0 %v303
    %346 = vmatprep.subr.bf16.mxu0 0
    %347 = vmatpush1.bf16.msra.mxu0 %v304
    %348 = vmatprep.subr.bf16.mxu0 0
    %349 = vmatpush1.bf16.msra.mxu0 %v305
    %350 = vmatprep.subr.bf16.mxu0 0
    %351 = vmatpush1.bf16.msra.mxu0 %v306
    %352 = vmatprep.subr.bf16.mxu0 0
    %353 = vmatpush1.bf16.msra.mxu0 %v307
    %354 = vmatprep.subr.bf16.mxu0 0
    %355 = vmatpush1.bf16.msra.mxu0 %v308
    %356 = vmatprep.subr.bf16.mxu0 0
    %357 = vmatpush1.bf16.msra.mxu0 %v309
    %358 = vmatprep.mubr.bf16.mxu0 %v227
    %359 = vmatmul.mubr.bf16.gmra.mrb[0].mxu0 %v226
    %v360 = vpop.f32.mrb[0].mxu0
    %v361 = vadd.f32 %v224, %v360
    %v362 = vpop.f32.mrb[0].mxu0
    %v363 = vpop.f32.mrb[0].mxu0
    %v364 = vadd.f32 %v224, %v363
    %v365 = vpop.f32.mrb[0].mxu0
    %366 = vdwg.mxu0
    %367 = vst [vmem:[#allocation10] sm:$0xff] %v361
    %368 = vst [vmem:[#allocation10 + $0x8] sm:$0xff] %v364
    // Predicated region
    $region38: #{tpu_custom_call.1} parent=1 // pred_check
      _
    $region39: #{tpu_custom_call.1} parent=1 // pred_check_branch
      %370 = sbr.rel (0) target = $region41
    $region40: #{tpu_custom_call.1} parent=1 // pred_region
      %s372 = ssub.s32 256, 256
      %373 = vsyncadd [#allocation4], %s372
      %s374 = sshll.u32 [#allocation10], 4
      %s375 = int_to_ptr.vmem [resolvable:$true] %s374
      %380 = dma.vmem_to_hbm [thread:$0]  %s375, 256, %s5, [#allocation4], 128, 128, 8
    $region41: #{tpu_custom_call.1} parent=1 // pred_fallthru
      _
    // Predicated region
    $region42: #{tpu_custom_call.1} parent=1 // pred_check
      _
    $region43: #{tpu_custom_call.1} parent=1 // pred_check_branch
      %382 = sbr.rel (0) target = $region45
    $region44: #{tpu_custom_call.1} parent=1 // pred_region
      %383 = dma.done [#allocation4], 256
    $region45: #{tpu_custom_call.1} parent=1 // pred_fallthru
      _
    %384 = vsyncpa [#allocation3], 1
    %385 = vsyncpa [#allocation6], 1
    %386 = vsyncpa [#allocation9], 1
    %387 = vsyncpa [#allocation4], 1

</llo_original>
